<compile_context>
chip_gen: v5e
topology: v5e:2x2
jax: 0.10.0
libtpu: 0.0.40
codegen_flags: <defaults>
</compile_context>

<pallas_src>
import functools

import jax
import jax.numpy as jnp
from jax import lax
from jax.experimental import pallas as pl
from jax.experimental.pallas import tpu as pltpu

EPS = 1e-5
LANES = 128


# --------------------------------------------------------------------------------------
# Kernels
# --------------------------------------------------------------------------------------
def _stats_kernel(patches_ref, w_ref, b_ref, gamma_ref, beta_ref,
                  scale_ref, shift_ref, sum_ref, ssq_ref, *, m_total, eps):
    """Pass 1: accumulate per-channel sum / sum-of-squares of y = patches @ w + b,
    finalize fused BN (scale, shift) on the last grid step."""
    i = pl.program_id(0)
    tm = patches_ref.shape[0]

    @pl.when(i == 0)
    def _():
        sum_ref[...] = jnp.zeros_like(sum_ref)
        ssq_ref[...] = jnp.zeros_like(ssq_ref)

    # bf16 MXU matmul, f32 accumulation.
    y = jnp.dot(patches_ref[...], w_ref[...], preferred_element_type=jnp.float32)
    y = y + b_ref[...]

    # Mask rows that are padding of M so they don't pollute the batch statistics.
    row = lax.broadcasted_iota(jnp.int32, (tm, 1), 0) + i * tm
    y = jnp.where(row < m_total, y, 0.0)

    sum_ref[...] += jnp.sum(y, axis=0, keepdims=True)
    ssq_ref[...] += jnp.sum(y * y, axis=0, keepdims=True)

    @pl.when(i == pl.num_programs(0) - 1)
    def _():
        inv_m = 1.0 / m_total
        mean = sum_ref[...] * inv_m
        var = jnp.maximum(ssq_ref[...] * inv_m - mean * mean, 0.0)  # guard cancellation
        inv_std = lax.rsqrt(var + eps)
        scale = gamma_ref[...] * inv_std        # padded channels: gamma == 0 -> scale == 0
        scale_ref[...] = scale
        shift_ref[...] = beta_ref[...] - mean * scale


def _normalize_kernel(patches_ref, w_ref, b_ref, scale_ref, shift_ref, o_ref):
    """Pass 2: recompute the conv tile and apply the fused normalization."""
    y = jnp.dot(patches_ref[...], w_ref[...], preferred_element_type=jnp.float32)
    y = y + b_ref[...]
    o_ref[...] = (y * scale_ref[...] + shift_ref[...]).astype(o_ref.dtype)


# --------------------------------------------------------------------------------------
# Wrapper
# --------------------------------------------------------------------------------------
def _im2col_nchw(x, kh, kw, stride, padding):
    """x: [N, C, H, W] -> patches [N*Ho*Wo, C*kh*kw], feature order (C, kh, kw)
    (matches PyTorch Conv2d weight flattening)."""
    N, C, H, W = x.shape
    xp = jnp.pad(x, ((0, 0), (0, 0), (padding, padding), (padding, padding)))
    Ho = (H + 2 * padding - kh) // stride + 1
    Wo = (W + 2 * padding - kw) // stride + 1
    taps = []
    for i in range(kh):
        for j in range(kw):
            taps.append(xp[:, :, i:i + Ho * stride:stride, j:j + Wo * stride:stride])
    p = jnp.stack(taps, axis=0)                  # [kh*kw, N, C, Ho, Wo]
    p = jnp.transpose(p, (1, 3, 4, 2, 0))        # [N, Ho, Wo, C, kh*kw]
    return p.reshape(N * Ho * Wo, C * kh * kw), Ho, Wo


def _round_up(a, b):
    return (a + b - 1) // b * b


def _choose_tile_m(m, k, cpad, budget_bytes=16 * 1024 * 1024):
    """Pick the M tile so double-buffered (bf16 patches + f32 output) tiles fit a
    conservative VMEM budget (safe for v7x's 64 MiB/TC with a 32 MiB scoped limit)."""
    per_row = 2 * (k * 2) + 2 * (cpad * 4)
    tm = budget_bytes // max(per_row, 1)
    tm = max(16, min(1024, (tm // 16) * 16))
    return min(tm, _round_up(m, 16))


@functools.partial(jax.jit, static_argnames=("stride", "padding", "tile_m"))
def reset_layer_forward(x, conv_w, conv_b, bn_gamma, bn_beta, *,
                        stride=1, padding=1, tile_m=None):
    """Forward of ResetLayer: BatchNorm2d(Conv2d(x)) with batch statistics.
    x: [N, C_in, H, W] (NCHW, like PyTorch). conv_w: [C_out, C_in, kh, kw]."""
    N, Cin, H, W = x.shape
    Cout, _, kh, kw = conv_w.shape

    # im2col in bf16 (halves the dominant HBM stream feeding the kernels).
    patches, Ho, Wo = _im2col_nchw(x.astype(jnp.bfloat16), kh, kw, stride, padding)
    M, K = patches.shape
    Cpad = _round_up(Cout, LANES)

    tm = tile_m if tile_m is not None else _choose_tile_m(M, K, Cpad)
    m_pad = _round_up(M, tm)
    n_tiles = m_pad // tm
    if m_pad != M:
        patches = jnp.pad(patches, ((0, m_pad - M), (0, 0)))

    # Lane-dense (128-wide) channel dimension; gamma padded with 0 so padded channels
    # produce exact zeros (never rsqrt(eps) garbage).
    w2d = jnp.zeros((K, Cpad), jnp.bfloat16).at[:, :Cout].set(
        conv_w.reshape(Cout, K).T.astype(jnp.bfloat16))
    b2d = jnp.zeros((1, Cpad), jnp.float32).at[:, :Cout].set(conv_b.reshape(1, Cout))
    g2d = jnp.zeros((1, Cpad), jnp.float32).at[:, :Cout].set(bn_gamma.reshape(1, Cout))
    be2d = jnp.zeros((1, Cpad), jnp.float32).at[:, :Cout].set(bn_beta.reshape(1, Cout))

    patch_bytes = m_pad * K * 2
    w_bytes = K * Cpad * 2
    vec_bytes = 5 * Cpad * 4
    flops = 2 * m_pad * K * Cpad

    # ---- Pass 1: per-channel batch statistics -> fused (scale, shift) -----------------
    scale, shift = pl.pallas_call(
        functools.partial(_stats_kernel, m_total=M, eps=EPS),
        out_shape=(jax.ShapeDtypeStruct((1, Cpad), jnp.float32),
                   jax.ShapeDtypeStruct((1, Cpad), jnp.float32)),
        grid=(n_tiles,),
        in_specs=[
            pl.BlockSpec((tm, K), lambda i: (i, 0)),
            pl.BlockSpec((K, Cpad), lambda i: (0, 0)),
            pl.BlockSpec((1, Cpad), lambda i: (0, 0)),
            pl.BlockSpec((1, Cpad), lambda i: (0, 0)),
            pl.BlockSpec((1, Cpad), lambda i: (0, 0)),
        ],
        out_specs=(pl.BlockSpec((1, Cpad), lambda i: (0, 0)),
                   pl.BlockSpec((1, Cpad), lambda i: (0, 0))),
        scratch_shapes=[pltpu.VMEM((1, Cpad), jnp.float32),
                        pltpu.VMEM((1, Cpad), jnp.float32)],
        compiler_params=pltpu.CompilerParams(
            dimension_semantics=("arbitrary",),          # reduction over M
            vmem_limit_bytes=32 * 1024 * 1024),
        cost_estimate=pl.CostEstimate(
            flops=flops, transcendentals=Cpad,
            bytes_accessed=patch_bytes + w_bytes + vec_bytes),
    )(patches, w2d, b2d, g2d, be2d)

    # ---- Pass 2: recompute conv tile and normalize (out = y*scale + shift) ------------
    out_flat = pl.pallas_call(
        _normalize_kernel,
        out_shape=jax.ShapeDtypeStruct((m_pad, Cpad), x.dtype),
        grid=(n_tiles,),
        in_specs=[
            pl.BlockSpec((tm, K), lambda i: (i, 0)),
            pl.BlockSpec((K, Cpad), lambda i: (0, 0)),
            pl.BlockSpec((1, Cpad), lambda i: (0, 0)),
            pl.BlockSpec((1, Cpad), lambda i: (0, 0)),
            pl.BlockSpec((1, Cpad), lambda i: (0, 0)),
        ],
        out_specs=pl.BlockSpec((tm, Cpad), lambda i: (i, 0)),
        compiler_params=pltpu.CompilerParams(
            dimension_semantics=("parallel",),           # independent rows -> v7x 2 TCs
            vmem_limit_bytes=32 * 1024 * 1024),
        cost_estimate=pl.CostEstimate(
            flops=flops + 2 * m_pad * Cpad, transcendentals=0,
            bytes_accessed=patch_bytes + w_bytes + vec_bytes
                           + m_pad * Cpad * x.dtype.itemsize),
    )(patches, w2d, b2d, scale, shift)

    out = out_flat[:M, :Cout].reshape(N, Ho, Wo, Cout)
    return jnp.transpose(out, (0, 3, 1, 2))              # back to NCHW


# --------------------------------------------------------------------------------------
# Reference + demo
# --------------------------------------------------------------------------------------
def _reference(x, conv_w, conv_b, bn_gamma, bn_beta, stride=1, padding=1,
               conv_dtype=jnp.float32):
    y = lax.conv_general_dilated(
        x.astype(conv_dtype), conv_w.astype(conv_dtype),
        window_strides=(stride, stride),
        padding=[(padding, padding), (padding, padding)],
        dimension_numbers=("NCHW", "OIHW", "NCHW"),
        preferred_element_type=jnp.float32)
    y = y + conv_b.reshape(1, -1, 1, 1)
    mean = jnp.mean(y, axis=(0, 2, 3), keepdims=True)
    var = jnp.mean((y - mean) ** 2, axis=(0, 2, 3), keepdims=True)
    return (y - mean) * lax.rsqrt(var + EPS) * bn_gamma.reshape(1, -1, 1, 1) \
        + bn_beta.reshape(1, -1, 1, 1)


if __name__ == "__main__":
    import numpy as np

    key = jax.random.PRNGKey(0)
    k_x, k_w, k_b, k_g, k_be = jax.random.split(key, 5)

    N, Cin, H, W = 2, 4, 16, 16
    Cout, kh, kw = 8, 3, 3

    x = jax.random.normal(k_x, (N, Cin, H, W), dtype=jnp.float32)
    fan_in = Cin * kh * kw
    conv_w = jax.random.uniform(k_w, (Cout, Cin, kh, kw), jnp.float32,
                                minval=-1.0, maxval=1.0) / jnp.sqrt(fan_in)
    conv_b = jax.random.uniform(k_b, (Cout,), jnp.float32,
                                minval=-1.0, maxval=1.0) / jnp.sqrt(fan_in)
    bn_gamma = 1.0 + 0.1 * jax.random.normal(k_g, (Cout,), dtype=jnp.float32)
    bn_beta = 0.1 * jax.random.normal(k_be, (Cout,), dtype=jnp.float32)

    # tile_m=128 so the demo shapes (M = 2*16*16 = 512) exercise the 4-step tiled
    # accumulation / pipelining path; production use leaves tile_m=None (auto-sized).
    out = reset_layer_forward(x, conv_w, conv_b, bn_gamma, bn_beta,
                              stride=1, padding=1, tile_m=128)
    out = jax.block_until_ready(out)

    # Tight check against a reference matching the kernel's bf16 matmul precision.
    ref_bf16 = _reference(x, conv_w, conv_b, bn_gamma, bn_beta, conv_dtype=jnp.bfloat16)
    np.testing.assert_allclose(np.asarray(out), np.asarray(ref_bf16),
                               rtol=2e-3, atol=2e-3)

    # Loose check against the full-f32 module semantics (bf16 only in the conv inputs).
    ref_f32 = _reference(x, conv_w, conv_b, bn_gamma, bn_beta, conv_dtype=jnp.float32)
    np.testing.assert_allclose(np.asarray(out), np.asarray(ref_f32),
                               rtol=5e-2, atol=5e-2)

    print("KERNEL_OK")
</pallas_src>

<mosaic_0001>
module attributes {stable_mosaic.version = 11 : i64} {
  func.func @_normalize_kernel(%arg0: i32, %arg1: memref<128x36xbf16, #tpu.memory_space<vmem>>, %arg2: memref<36x128xbf16, #tpu.memory_space<vmem>>, %arg3: memref<1x128xf32, #tpu.memory_space<vmem>>, %arg4: memref<1x128xf32, #tpu.memory_space<vmem>>, %arg5: memref<1x128xf32, #tpu.memory_space<vmem>>, %arg6: memref<128x128xf32, #tpu.memory_space<vmem>>) attributes {dimension_semantics = [#tpu.dimension_semantics<parallel>], iteration_bounds = array<i64: 4>, scalar_prefetch = 0 : i64, scratch_operands = 0 : i64, tpu.core_type = #tpu.core_type<tc>, window_params = [{transform_indices = @transform_0, window_bounds = array<i64: 128, 36>}, {pipeline_mode = #tpu.pipeline_mode<synchronous>, transform_indices = @transform_1, window_bounds = array<i64: 36, 128>}, {pipeline_mode = #tpu.pipeline_mode<synchronous>, transform_indices = @transform_2, window_bounds = array<i64: 1, 128>}, {pipeline_mode = #tpu.pipeline_mode<synchronous>, transform_indices = @transform_3, window_bounds = array<i64: 1, 128>}, {pipeline_mode = #tpu.pipeline_mode<synchronous>, transform_indices = @transform_4, window_bounds = array<i64: 1, 128>}, {transform_indices = @transform_5, window_bounds = array<i64: 128, 128>}]} {
    %c0 = arith.constant 0 : index
    %c0_0 = arith.constant 0 : index
    %0 = vector.load %arg1[%c0, %c0_0] : memref<128x36xbf16, #tpu.memory_space<vmem>>, vector<128x36xbf16>
    %c0_1 = arith.constant 0 : index
    %c0_2 = arith.constant 0 : index
    %1 = vector.load %arg2[%c0_1, %c0_2] : memref<36x128xbf16, #tpu.memory_space<vmem>>, vector<36x128xbf16>
    %cst = arith.constant dense<0.000000e+00> : vector<128x128xf32>
    %2 = tpu.matmul %0, %1, %cst {dimension_numbers = #tpu.dot_dimension_numbers<[1], [0], [0], [1], [0, 0, 1, 1], [], []>} : vector<128x36xbf16>, vector<36x128xbf16>, vector<128x128xf32> -> vector<128x128xf32>
    %c0_3 = arith.constant 0 : index
    %c0_4 = arith.constant 0 : index
    %3 = vector.load %arg3[%c0_3, %c0_4] : memref<1x128xf32, #tpu.memory_space<vmem>>, vector<1x128xf32>
    %4 = vector.broadcast %3 : vector<1x128xf32> to vector<128x128xf32>
    %5 = arith.addf %2, %4 : vector<128x128xf32>
    %c0_5 = arith.constant 0 : index
    %c0_6 = arith.constant 0 : index
    %6 = vector.load %arg4[%c0_5, %c0_6] : memref<1x128xf32, #tpu.memory_space<vmem>>, vector<1x128xf32>
    %7 = vector.broadcast %6 : vector<1x128xf32> to vector<128x128xf32>
    %8 = arith.mulf %5, %7 : vector<128x128xf32>
    %c0_7 = arith.constant 0 : index
    %c0_8 = arith.constant 0 : index
    %9 = vector.load %arg5[%c0_7, %c0_8] : memref<1x128xf32, #tpu.memory_space<vmem>>, vector<1x128xf32>
    %10 = vector.broadcast %9 : vector<1x128xf32> to vector<128x128xf32>
    %11 = arith.addf %8, %10 : vector<128x128xf32>
    %c0_9 = arith.constant 0 : index
    %c0_10 = arith.constant 0 : index
    %12 = vector.load %arg6[%c0_9, %c0_10] : memref<128x128xf32, #tpu.memory_space<vmem>>, vector<128x128xf32>
    tpu.vector_store %arg6[%c0_9, %c0_10], %11 {strides = array<i32>} : memref<128x128xf32, #tpu.memory_space<vmem>>, vector<128x128xf32>,
    return
  }
  func.func @transform_0(%arg0: i32) -> (i32, i32) {
    %c0_i32 = arith.constant 0 : i32
    %c0_i32_0 = arith.constant 0 : i32
    return %arg0, %c0_i32 : i32, i32
  }
  func.func @transform_1(%arg0: i32) -> (i32, i32) {
    %c0_i32 = arith.constant 0 : i32
    %c0_i32_0 = arith.constant 0 : i32
    %c0_i32_1 = arith.constant 0 : i32
    return %c0_i32, %c0_i32_0 : i32, i32
  }
  func.func @transform_2(%arg0: i32) -> (i32, i32) {
    %c0_i32 = arith.constant 0 : i32
    %c0_i32_0 = arith.constant 0 : i32
    %c0_i32_1 = arith.constant 0 : i32
    return %c0_i32, %c0_i32_0 : i32, i32
  }
  func.func @transform_3(%arg0: i32) -> (i32, i32) {
    %c0_i32 = arith.constant 0 : i32
    %c0_i32_0 = arith.constant 0 : i32
    %c0_i32_1 = arith.constant 0 : i32
    return %c0_i32, %c0_i32_0 : i32, i32
  }
  func.func @transform_4(%arg0: i32) -> (i32, i32) {
    %c0_i32 = arith.constant 0 : i32
    %c0_i32_0 = arith.constant 0 : i32
    %c0_i32_1 = arith.constant 0 : i32
    return %c0_i32, %c0_i32_0 : i32, i32
  }
  func.func @transform_5(%arg0: i32) -> (i32, i32) {
    %c0_i32 = arith.constant 0 : i32
    %c0_i32_0 = arith.constant 0 : i32
    return %arg0, %c0_i32 : i32, i32
  }
}

module attributes {stable_mosaic.version = 11 : i64} {
  func.func @_stats_kernel(%arg0: i32, %arg1: memref<128x36xbf16, #tpu.memory_space<vmem>>, %arg2: memref<36x128xbf16, #tpu.memory_space<vmem>>, %arg3: memref<1x128xf32, #tpu.memory_space<vmem>>, %arg4: memref<1x128xf32, #tpu.memory_space<vmem>>, %arg5: memref<1x128xf32, #tpu.memory_space<vmem>>, %arg6: memref<1x128xf32, #tpu.memory_space<vmem>>, %arg7: memref<1x128xf32, #tpu.memory_space<vmem>>, %arg8: memref<1x128xf32, #tpu.memory_space<vmem>>, %arg9: memref<1x128xf32, #tpu.memory_space<vmem>>) attributes {dimension_semantics = [#tpu.dimension_semantics<arbitrary>], iteration_bounds = array<i64: 4>, scalar_prefetch = 0 : i64, scratch_operands = 2 : i64, tpu.core_type = #tpu.core_type<tc>, window_params = [{transform_indices = @transform_0, window_bounds = array<i64: 128, 36>}, {pipeline_mode = #tpu.pipeline_mode<synchronous>, transform_indices = @transform_1, window_bounds = array<i64: 36, 128>}, {pipeline_mode = #tpu.pipeline_mode<synchronous>, transform_indices = @transform_2, window_bounds = array<i64: 1, 128>}, {pipeline_mode = #tpu.pipeline_mode<synchronous>, transform_indices = @transform_3, window_bounds = array<i64: 1, 128>}, {pipeline_mode = #tpu.pipeline_mode<synchronous>, transform_indices = @transform_4, window_bounds = array<i64: 1, 128>}, {pipeline_mode = #tpu.pipeline_mode<synchronous>, transform_indices = @transform_5, window_bounds = array<i64: 1, 128>}, {pipeline_mode = #tpu.pipeline_mode<synchronous>, transform_indices = @transform_6, window_bounds = array<i64: 1, 128>}]} {
    %c0_i32 = arith.constant 0 : i32
    %0 = arith.cmpi eq, %arg0, %c0_i32 : i32
    %1 = arith.extui %0 : i1 to i32
    %c0_i32_0 = arith.constant 0 : i32
    %2 = arith.cmpi ne, %1, %c0_i32_0 : i32
    scf.if %2 {
      %cst_18 = arith.constant 0.000000e+00 : f32
      %33 = vector.broadcast %cst_18 : f32 to vector<1x128xf32>
      %c0_19 = arith.constant 0 : index
      %c0_20 = arith.constant 0 : index
      %34 = vector.load %arg8[%c0_19, %c0_20] : memref<1x128xf32, #tpu.memory_space<vmem>>, vector<1x128xf32>
      tpu.vector_store %arg8[%c0_19, %c0_20], %33 {strides = array<i32>} : memref<1x128xf32, #tpu.memory_space<vmem>>, vector<1x128xf32>,
      %cst_21 = arith.constant 0.000000e+00 : f32
      %35 = vector.broadcast %cst_21 : f32 to vector<1x128xf32>
      %c0_22 = arith.constant 0 : index
      %c0_23 = arith.constant 0 : index
      %36 = vector.load %arg9[%c0_22, %c0_23] : memref<1x128xf32, #tpu.memory_space<vmem>>, vector<1x128xf32>
      tpu.vector_store %arg9[%c0_22, %c0_23], %35 {strides = array<i32>} : memref<1x128xf32, #tpu.memory_space<vmem>>, vector<1x128xf32>,
    } else {
    }
    %c0 = arith.constant 0 : index
    %c0_1 = arith.constant 0 : index
    %3 = vector.load %arg1[%c0, %c0_1] : memref<128x36xbf16, #tpu.memory_space<vmem>>, vector<128x36xbf16>
    %c0_2 = arith.constant 0 : index
    %c0_3 = arith.constant 0 : index
    %4 = vector.load %arg2[%c0_2, %c0_3] : memref<36x128xbf16, #tpu.memory_space<vmem>>, vector<36x128xbf16>
    %cst = arith.constant dense<0.000000e+00> : vector<128x128xf32>
    %5 = tpu.matmul %3, %4, %cst {dimension_numbers = #tpu.dot_dimension_numbers<[1], [0], [0], [1], [0, 0, 1, 1], [], []>} : vector<128x36xbf16>, vector<36x128xbf16>, vector<128x128xf32> -> vector<128x128xf32>
    %c0_4 = arith.constant 0 : index
    %c0_5 = arith.constant 0 : index
    %6 = vector.load %arg3[%c0_4, %c0_5] : memref<1x128xf32, #tpu.memory_space<vmem>>, vector<1x128xf32>
    %7 = vector.broadcast %6 : vector<1x128xf32> to vector<128x128xf32>
    %8 = arith.addf %5, %7 : vector<128x128xf32>
    %9 = tpu.iota {dimensions = array<i32: 0>} : vector<128x1xi32>
    %c128_i32 = arith.constant 128 : i32
    %10 = arith.muli %arg0, %c128_i32 : i32
    %11 = vector.broadcast %10 : i32 to vector<128x1xi32>
    %12 = arith.addi %9, %11 : vector<128x1xi32>
    %c512_i32 = arith.constant 512 : i32
    %13 = vector.broadcast %c512_i32 : i32 to vector<128x1xi32>
    %14 = arith.cmpi slt, %12, %13 : vector<128x1xi32>
    %cst_6 = arith.constant 0.000000e+00 : f32
    %15 = vector.shape_cast %14 : vector<128x1xi1> to vector<128x1xi1>
    %16 = vector.broadcast %15 : vector<128x1xi1> to vector<128x128xi1>
    %17 = vector.broadcast %cst_6 : f32 to vector<128x128xf32>
    %18 = arith.select %16, %8, %17 : vector<128x128xi1>, vector<128x128xf32>
    %c0_7 = arith.constant 0 : index
    %c0_8 = arith.constant 0 : index
    %19 = vector.load %arg8[%c0_7, %c0_8] : memref<1x128xf32, #tpu.memory_space<vmem>>, vector<1x128xf32>
    %cst_9 = arith.constant dense<0.000000e+00> : vector<128xf32>
    %20 = vector.multi_reduction <add>, %18, %cst_9 [0] : vector<128x128xf32> to vector<128xf32>
    %21 = vector.shape_cast %20 : vector<128xf32> to vector<1x128xf32>
    %22 = arith.addf %19, %21 : vector<1x128xf32>
    %c0_10 = arith.constant 0 : index
    %c0_11 = arith.constant 0 : index
    %23 = vector.load %arg8[%c0_10, %c0_11] : memref<1x128xf32, #tpu.memory_space<vmem>>, vector<1x128xf32>
    tpu.vector_store %arg8[%c0_10, %c0_11], %22 {strides = array<i32>} : memref<1x128xf32, #tpu.memory_space<vmem>>, vector<1x128xf32>,
    %c0_12 = arith.constant 0 : index
    %c0_13 = arith.constant 0 : index
    %24 = vector.load %arg9[%c0_12, %c0_13] : memref<1x128xf32, #tpu.memory_space<vmem>>, vector<1x128xf32>
    %25 = arith.mulf %18, %18 : vector<128x128xf32>
    %cst_14 = arith.constant dense<0.000000e+00> : vector<128xf32>
    %26 = vector.multi_reduction <add>, %25, %cst_14 [0] : vector<128x128xf32> to vector<128xf32>
    %27 = vector.shape_cast %26 : vector<128xf32> to vector<1x128xf32>
    %28 = arith.addf %24, %27 : vector<1x128xf32>
    %c0_15 = arith.constant 0 : index
    %c0_16 = arith.constant 0 : index
    %29 = vector.load %arg9[%c0_15, %c0_16] : memref<1x128xf32, #tpu.memory_space<vmem>>, vector<1x128xf32>
    tpu.vector_store %arg9[%c0_15, %c0_16], %28 {strides = array<i32>} : memref<1x128xf32, #tpu.memory_space<vmem>>, vector<1x128xf32>,
    %c3_i32 = arith.constant 3 : i32
    %30 = arith.cmpi eq, %arg0, %c3_i32 : i32
    %31 = arith.extui %30 : i1 to i32
    %c0_i32_17 = arith.constant 0 : i32
    %32 = arith.cmpi ne, %31, %c0_i32_17 : i32
    scf.if %32 {
      %c0_18 = arith.constant 0 : index
      %c0_19 = arith.constant 0 : index
      %33 = vector.load %arg8[%c0_18, %c0_19] : memref<1x128xf32, #tpu.memory_space<vmem>>, vector<1x128xf32>
      %cst_20 = arith.constant 0.001953125 : f32
      %34 = vector.broadcast %cst_20 : f32 to vector<1x128xf32>
      %35 = arith.mulf %33, %34 : vector<1x128xf32>
      %c0_21 = arith.constant 0 : index
      %c0_22 = arith.constant 0 : index
      %36 = vector.load %arg9[%c0_21, %c0_22] : memref<1x128xf32, #tpu.memory_space<vmem>>, vector<1x128xf32>
      %cst_23 = arith.constant 0.001953125 : f32
      %37 = vector.broadcast %cst_23 : f32 to vector<1x128xf32>
      %38 = arith.mulf %36, %37 : vector<1x128xf32>
      %39 = arith.mulf %35, %35 : vector<1x128xf32>
      %40 = arith.subf %38, %39 : vector<1x128xf32>
      %cst_24 = arith.constant 0.000000e+00 : f32
      %41 = vector.broadcast %cst_24 : f32 to vector<1x128xf32>
      %42 = arith.maximumf %40, %41 : vector<1x128xf32>
      %cst_25 = arith.constant 9.99999974E-6 : f32
      %43 = vector.broadcast %cst_25 : f32 to vector<1x128xf32>
      %44 = arith.addf %42, %43 : vector<1x128xf32>
      %45 = math.rsqrt %44 : vector<1x128xf32>
      %c0_26 = arith.constant 0 : index
      %c0_27 = arith.constant 0 : index
      %46 = vector.load %arg4[%c0_26, %c0_27] : memref<1x128xf32, #tpu.memory_space<vmem>>, vector<1x128xf32>
      %47 = arith.mulf %46, %45 : vector<1x128xf32>
      %c0_28 = arith.constant 0 : index
      %c0_29 = arith.constant 0 : index
      %48 = vector.load %arg6[%c0_28, %c0_29] : memref<1x128xf32, #tpu.memory_space<vmem>>, vector<1x128xf32>
      tpu.vector_store %arg6[%c0_28, %c0_29], %47 {strides = array<i32>} : memref<1x128xf32, #tpu.memory_space<vmem>>, vector<1x128xf32>,
      %c0_30 = arith.constant 0 : index
      %c0_31 = arith.constant 0 : index
      %49 = vector.load %arg5[%c0_30, %c0_31] : memref<1x128xf32, #tpu.memory_space<vmem>>, vector<1x128xf32>
      %50 = arith.mulf %35, %47 : vector<1x128xf32>
      %51 = arith.subf %49, %50 : vector<1x128xf32>
      %c0_32 = arith.constant 0 : index
      %c0_33 = arith.constant 0 : index
      %52 = vector.load %arg7[%c0_32, %c0_33] : memref<1x128xf32, #tpu.memory_space<vmem>>, vector<1x128xf32>
      tpu.vector_store %arg7[%c0_32, %c0_33], %51 {strides = array<i32>} : memref<1x128xf32, #tpu.memory_space<vmem>>, vector<1x128xf32>,
    } else {
    }
    return
  }
  func.func @transform_0(%arg0: i32) -> (i32, i32) {
    %c0_i32 = arith.constant 0 : i32
    %c0_i32_0 = arith.constant 0 : i32
    return %arg0, %c0_i32 : i32, i32
  }
  func.func @transform_1(%arg0: i32) -> (i32, i32) {
    %c0_i32 = arith.constant 0 : i32
    %c0_i32_0 = arith.constant 0 : i32
    %c0_i32_1 = arith.constant 0 : i32
    return %c0_i32, %c0_i32_0 : i32, i32
  }
  func.func @transform_2(%arg0: i32) -> (i32, i32) {
    %c0_i32 = arith.constant 0 : i32
    %c0_i32_0 = arith.constant 0 : i32
    %c0_i32_1 = arith.constant 0 : i32
    return %c0_i32, %c0_i32_0 : i32, i32
  }
  func.func @transform_3(%arg0: i32) -> (i32, i32) {
    %c0_i32 = arith.constant 0 : i32
    %c0_i32_0 = arith.constant 0 : i32
    %c0_i32_1 = arith.constant 0 : i32
    return %c0_i32, %c0_i32_0 : i32, i32
  }
  func.func @transform_4(%arg0: i32) -> (i32, i32) {
    %c0_i32 = arith.constant 0 : i32
    %c0_i32_0 = arith.constant 0 : i32
    %c0_i32_1 = arith.constant 0 : i32
    return %c0_i32, %c0_i32_0 : i32, i32
  }
  func.func @transform_5(%arg0: i32) -> (i32, i32) {
    %c0_i32 = arith.constant 0 : i32
    %c0_i32_0 = arith.constant 0 : i32
    %c0_i32_1 = arith.constant 0 : i32
    return %c0_i32, %c0_i32_0 : i32, i32
  }
  func.func @transform_6(%arg0: i32) -> (i32, i32) {
    %c0_i32 = arith.constant 0 : i32
    %c0_i32_0 = arith.constant 0 : i32
    %c0_i32_1 = arith.constant 0 : i32
    return %c0_i32, %c0_i32_0 : i32, i32
  }
}

</mosaic_0001>

<llo_original>
// kernel: reset_layer_forward.2
$region0: #{reset_layer_forward.2}
  #allocation0 [shape = 'u32[]', space=smem, size = 0x4, offset = 0x4, fixed_abs, tag = 'smem constant byte address 0x4 - core index']
  #allocation1 [shape = 'u32[72,128]{1,0:T(1,128)}', space=vmem, size = 0x9000, scoped, tag = 'internal scratch']
  #allocation2 [shape = 'f32[1,128]{1,0:T(1,128)}', space=vmem, size = 0x200, scoped, tag = 'scratch operand']
  #allocation3 [shape = 'f32[1,128]{1,0:T(1,128)}', space=vmem, size = 0x200, scoped, tag = 'scratch operand']
  %s0 = inlined_call_operand.vmem [shape: bf16[512,36], index: 0, kind: input, shape index: {}]
  %s1 = inlined_call_operand.vmem [shape: bf16[36,128], index: 1, kind: input, shape index: {}]
  %s2 = inlined_call_operand.vmem [shape: f32[1,128], index: 2, kind: input, shape index: {}]
  %s3 = inlined_call_operand.vmem [shape: f32[1,128], index: 3, kind: input, shape index: {}]
  %s4 = inlined_call_operand.vmem [shape: f32[1,128], index: 4, kind: input, shape index: {}]
  %s5 = inlined_call_operand.vmem [shape: f32[1,128], index: 5, kind: output, shape index: {0}]
  %s6 = inlined_call_operand.vmem [shape: f32[1,128], index: 6, kind: output, shape index: {1}]
  %7 = xla_tuple %s5, %s6
  %s8 = sld [smem:[#allocation0]]
  $region69: #{reset_layer_forward.2} parent=0
    _
  %s10 = ssub.s32 1, %s8
  %s11 = scalar_select 0, %s10, %s8
  loop: start=0, step=1, limit=6
  $region2: #{reset_layer_forward.2} parent=0 // loop_pre_header
    _
  $region3: #{reset_layer_forward.2} parent=0 // loop_header
    %s13 = sphi 0, %s17
    %p14 = scmp.ge.s32.totalorder %s13, 6
    %s23 = sphi 0, %s25
    %s26 = sphi 0, %s23
    %s27 = sphi 0, %s26
    %s43 = sphi 0, %s27
    %s47 = sphi 0, %s47
    %s49 = sphi 0, %s47
    %s50 = sphi 0, %s49
    %s64 = sphi 0, %s50
    %s68 = sphi 0, %s68
    %s70 = sphi 0, %s68
    %s71 = sphi 0, %s70
    %s85 = sphi 0, %s71
    %s89 = sphi 0, %s89
    %s91 = sphi 0, %s89
    %s92 = sphi 0, %s91
    %s106 = sphi 0, %s92
    %s110 = sphi 0, %s110
    %s112 = sphi 0, %s110
    %s113 = sphi 0, %s112
    %s127 = sphi 0, %s113
    %s131 = sphi 0, %s131
    %s133 = sphi 0, %s131
    %s134 = sphi 0, %s133
    %s148 = sphi 0, %s134
    %s152 = sphi 0, %s152
    %s154 = sphi 0, %s152
    %s155 = sphi 0, %s154
    %s169 = sphi 0, %s155
  $region4: #{reset_layer_forward.2} parent=0 // loop_header_branch
    %16 = sbr.rel (%p14) target = $region8
  $region5: #{reset_layer_forward.2} parent=0 // loop_body
    %s18 = ssub.s32 %s13, 1
    %s19 = ssub.s32 %s13, 2
    %s20 = sadd.s32 %s13, 1
    %s21 = ssub.s32 %s13, %s20
    %p22 = scmp.eq.s32.totalorder %s21, 0
    %s24 = sadd.s32 %s23, 1
    %s25 = scalar_select %p22, %s23, %s24
    %p28 = pneg %p22
    %p29 = scmp.eq.s32.totalorder %s13, 3
    %p30 = por %p28, %p29
    %p31 = scmp.ne.s32.totalorder %s23, %s26
    %p32 = scmp.eq.s32.totalorder %s13, 0
    %p33 = por %p31, %p32
    %p34 = scmp.ne.s32.totalorder %s23, %s26
    %p35 = scmp.eq.s32.totalorder %s18, 3
    %p36 = por %p34, %p35
    %p37 = scmp.ne.s32.totalorder %s26, %s27
    %p38 = scmp.eq.s32.totalorder %s18, 0
    %p39 = por %p37, %p38
    %p40 = scmp.ne.s32.totalorder %s26, %s27
    %p41 = scmp.eq.s32.totalorder %s19, 3
    %p42 = por %p40, %p41
    %p44 = scmp.ne.s32.totalorder %s27, %s43
    %p45 = scmp.eq.s32.totalorder %s19, 0
    %p46 = por %p44, %p45
    %s48 = sadd.s32 %s47, 1
    %p51 = scmp.eq.s32.totalorder %s13, 3
    %p52 = scmp.ne.s32.totalorder %s47, %s49
    %p53 = scmp.eq.s32.totalorder %s13, 0
    %p54 = por %p52, %p53
    %p55 = scmp.ne.s32.totalorder %s47, %s49
    %p56 = scmp.eq.s32.totalorder %s18, 3
    %p57 = por %p55, %p56
    %p58 = scmp.ne.s32.totalorder %s49, %s50
    %p59 = scmp.eq.s32.totalorder %s18, 0
    %p60 = por %p58, %p59
    %p61 = scmp.ne.s32.totalorder %s49, %s50
    %p62 = scmp.eq.s32.totalorder %s19, 3
    %p63 = por %p61, %p62
    %p65 = scmp.ne.s32.totalorder %s50, %s64
    %p66 = scmp.eq.s32.totalorder %s19, 0
    %p67 = por %p65, %p66
    %s69 = sadd.s32 %s68, 1
    %p72 = scmp.eq.s32.totalorder %s13, 3
    %p73 = scmp.ne.s32.totalorder %s68, %s70
    %p74 = scmp.eq.s32.totalorder %s13, 0
    %p75 = por %p73, %p74
    %p76 = scmp.ne.s32.totalorder %s68, %s70
    %p77 = scmp.eq.s32.totalorder %s18, 3
    %p78 = por %p76, %p77
    %p79 = scmp.ne.s32.totalorder %s70, %s71
    %p80 = scmp.eq.s32.totalorder %s18, 0
    %p81 = por %p79, %p80
    %p82 = scmp.ne.s32.totalorder %s70, %s71
    %p83 = scmp.eq.s32.totalorder %s19, 3
    %p84 = por %p82, %p83
    %p86 = scmp.ne.s32.totalorder %s71, %s85
    %p87 = scmp.eq.s32.totalorder %s19, 0
    %p88 = por %p86, %p87
    %s90 = sadd.s32 %s89, 1
    %p93 = scmp.eq.s32.totalorder %s13, 3
    %p94 = scmp.ne.s32.totalorder %s89, %s91
    %p95 = scmp.eq.s32.totalorder %s13, 0
    %p96 = por %p94, %p95
    %p97 = scmp.ne.s32.totalorder %s89, %s91
    %p98 = scmp.eq.s32.totalorder %s18, 3
    %p99 = por %p97, %p98
    %p100 = scmp.ne.s32.totalorder %s91, %s92
    %p101 = scmp.eq.s32.totalorder %s18, 0
    %p102 = por %p100, %p101
    %p103 = scmp.ne.s32.totalorder %s91, %s92
    %p104 = scmp.eq.s32.totalorder %s19, 3
    %p105 = por %p103, %p104
    %p107 = scmp.ne.s32.totalorder %s92, %s106
    %p108 = scmp.eq.s32.totalorder %s19, 0
    %p109 = por %p107, %p108
    %s111 = sadd.s32 %s110, 1
    %p114 = scmp.eq.s32.totalorder %s13, 3
    %p115 = scmp.ne.s32.totalorder %s110, %s112
    %p116 = scmp.eq.s32.totalorder %s13, 0
    %p117 = por %p115, %p116
    %p118 = scmp.ne.s32.totalorder %s110, %s112
    %p119 = scmp.eq.s32.totalorder %s18, 3
    %p120 = por %p118, %p119
    %p121 = scmp.ne.s32.totalorder %s112, %s113
    %p122 = scmp.eq.s32.totalorder %s18, 0
    %p123 = por %p121, %p122
    %p124 = scmp.ne.s32.totalorder %s112, %s113
    %p125 = scmp.eq.s32.totalorder %s19, 3
    %p126 = por %p124, %p125
    %p128 = scmp.ne.s32.totalorder %s113, %s127
    %p129 = scmp.eq.s32.totalorder %s19, 0
    %p130 = por %p128, %p129
    %s132 = sadd.s32 %s131, 1
    %p135 = scmp.eq.s32.totalorder %s13, 3
    %p136 = scmp.ne.s32.totalorder %s131, %s133
    %p137 = scmp.eq.s32.totalorder %s13, 0
    %p138 = por %p136, %p137
    %p139 = scmp.ne.s32.totalorder %s131, %s133
    %p140 = scmp.eq.s32.totalorder %s18, 3
    %p141 = por %p139, %p140
    %p142 = scmp.ne.s32.totalorder %s133, %s134
    %p143 = scmp.eq.s32.totalorder %s18, 0
    %p144 = por %p142, %p143
    %p145 = scmp.ne.s32.totalorder %s133, %s134
    %p146 = scmp.eq.s32.totalorder %s19, 3
    %p147 = por %p145, %p146
    %p149 = scmp.ne.s32.totalorder %s134, %s148
    %p150 = scmp.eq.s32.totalorder %s19, 0
    %p151 = por %p149, %p150
    %s153 = sadd.s32 %s152, 1
    %p156 = scmp.eq.s32.totalorder %s13, 3
    %p157 = scmp.ne.s32.totalorder %s152, %s154
    %p158 = scmp.eq.s32.totalorder %s13, 0
    %p159 = por %p157, %p158
    %p160 = scmp.ne.s32.totalorder %s152, %s154
    %p161 = scmp.eq.s32.totalorder %s18, 3
    %p162 = por %p160, %p161
    %p163 = scmp.ne.s32.totalorder %s154, %s155
    %p164 = scmp.eq.s32.totalorder %s18, 0
    %p165 = por %p163, %p164
    %p166 = scmp.ne.s32.totalorder %s154, %s155
    %p167 = scmp.eq.s32.totalorder %s19, 3
    %p168 = por %p166, %p167
    %p170 = scmp.ne.s32.totalorder %s155, %s169
    %p171 = scmp.eq.s32.totalorder %s19, 0
    %p172 = por %p170, %p171
    %p173 = scmp.le.s32.totalorder 1, %s13
    %p174 = scmp.lt.s32.totalorder %s13, 5
    %p175 = pnand %p173, %p174
    %p176 = pneg %p175
    // Predicated region
    $region9: #{reset_layer_forward.2} parent=5 // pred_check
      _
    $region10: #{reset_layer_forward.2} parent=5 // pred_check_branch
      %178 = sbr.rel (%p175) target = $region12
    $region11: #{reset_layer_forward.2} parent=5 // pred_region
      %s179 = ssub.s32 %s13, 1
      // Predicated region
      $region13: #{reset_layer_forward.2} parent=11 // pred_check
        %p180 = pneg %p60
      $region14: #{reset_layer_forward.2} parent=11 // pred_check_branch
        %182 = sbr.rel (%p180) target = $region16
      $region15: #{reset_layer_forward.2} parent=11 // pred_region
        _
      $region16: #{reset_layer_forward.2} parent=11 // pred_fallthru
        _
      // Predicated region
      $region17: #{reset_layer_forward.2} parent=11 // pred_check
        %p183 = pneg %p81
      $region18: #{reset_layer_forward.2} parent=11 // pred_check_branch
        %185 = sbr.rel (%p183) target = $region20
      $region19: #{reset_layer_forward.2} parent=11 // pred_region
        _
      $region20: #{reset_layer_forward.2} parent=11 // pred_fallthru
        _
      // Predicated region
      $region21: #{reset_layer_forward.2} parent=11 // pred_check
        %p186 = pneg %p102
      $region22: #{reset_layer_forward.2} parent=11 // pred_check_branch
        %188 = sbr.rel (%p186) target = $region24
      $region23: #{reset_layer_forward.2} parent=11 // pred_region
        _
      $region24: #{reset_layer_forward.2} parent=11 // pred_fallthru
        _
      // Predicated region
      $region25: #{reset_layer_forward.2} parent=11 // pred_check
        %p189 = pneg %p123
      $region26: #{reset_layer_forward.2} parent=11 // pred_check_branch
        %191 = sbr.rel (%p189) target = $region28
      $region27: #{reset_layer_forward.2} parent=11 // pred_region
        _
      $region28: #{reset_layer_forward.2} parent=11 // pred_fallthru
        _
    $region12: #{reset_layer_forward.2} parent=5 // pred_fallthru
      _
    %p192 = scmp.lt.s32.totalorder %s13, 4
    // Predicated region
    $region29: #{reset_layer_forward.2} parent=5 // pred_check
      %p193 = pneg %p192
    $region30: #{reset_layer_forward.2} parent=5 // pred_check_branch
      %195 = sbr.rel (%p193) target = $region32
    $region31: #{reset_layer_forward.2} parent=5 // pred_region
      // Predicated region
      $region33: #{reset_layer_forward.2} parent=31 // pred_check
        %p196 = pneg %p33
      $region34: #{reset_layer_forward.2} parent=31 // pred_check_branch
        %198 = sbr.rel (%p196) target = $region36
      $region35: #{reset_layer_forward.2} parent=31 // pred_region
        %s199 = smul.u32 16, %s13
        %p200 = scmp.lt.s32.totalorder %s199, 63
        %s201 = scalar_select %p200, %s199, 63
        %s202 = smul.addr %s201, 4
        %s203 = scalar_lea.vmem %s0, %s202
        %s204 = smul.u32 16, %s13
      $region36: #{reset_layer_forward.2} parent=31 // pred_fallthru
        _
    $region32: #{reset_layer_forward.2} parent=5 // pred_fallthru
      _
    %p205 = scmp.le.s32.totalorder 1, %s13
    %p206 = scmp.lt.s32.totalorder %s13, 5
    %p207 = pnand %p205, %p206
    %p208 = pneg %p207
    // Predicated region
    $region37: #{reset_layer_forward.2} parent=5 // pred_check
      _
    $region38: #{reset_layer_forward.2} parent=5 // pred_check_branch
      %210 = sbr.rel (%p207) target = $region40
    $region39: #{reset_layer_forward.2} parent=5 // pred_region
      %s211 = ssub.s32 %s13, 1
      %s212 = smul.u32 16, %s18
      %p213 = scmp.lt.s32.totalorder %s212, 63
      %s214 = scalar_select %p213, %s212, 63
      %s215 = smul.addr %s214, 4
      %s216 = scalar_lea.vmem %s0, %s215
      %p217 = pneg %p39
      %p218 = pneg %p36
      %p219 = pneg %p60
      %p220 = pneg %p57
      %p221 = pneg %p81
      %p222 = pneg %p78
      %p223 = pneg %p102
      %p224 = pneg %p99
      %p225 = pneg %p123
      %p226 = pneg %p120
      %p227 = pneg %p144
      %p228 = pneg %p141
      %p229 = pneg %p165
      %p230 = pneg %p162
      %s231 = smul.u32 16, %s18
      %p232 = scmp.lt.s32.totalorder %s231, 63
      %s233 = scalar_select %p232, %s231, 63
      %s234 = smul.addr %s233, 4
      %s235 = scalar_lea.vmem %s0, %s234
      %s236 = smul.u32 16, %s18
      %p238 = scmp.eq.s32.totalorder %s18, 0
      // Predicated region
      $region41: #{reset_layer_forward.2} parent=39 // pred_check
        %p239 = pneg %p238
      $region42: #{reset_layer_forward.2} parent=39 // pred_check_branch
        %241 = sbr.rel (%p239) target = $region44
      $region43: #{reset_layer_forward.2} parent=39 // pred_region
        %242 = vst [vmem:[#allocation2] sm:$0x1] 0.0
        %243 = vst [vmem:[#allocation3] sm:$0x1] 0.0
      $region44: #{reset_layer_forward.2} parent=39 // pred_fallthru
        _
      %v244 = vld [vmem:[%s235] sm:$0xf]
      %v245 = vld [vmem:[%s235 + $0x4] sm:$0xf]
      %v246 = vld [vmem:[%s235 + $0x8] sm:$0xf]
      %v247 = vld [vmem:[%s235 + $0xc] sm:$0xf]
      %v248 = vld [vmem:[%s235 + $0x10] sm:$0xf]
      %v249 = vld [vmem:[%s235 + $0x14] sm:$0xf]
      %v250 = vld [vmem:[%s235 + $0x18] sm:$0xf]
      %v251 = vld [vmem:[%s235 + $0x1c] sm:$0xf]
      %v252 = vld [vmem:[%s235 + $0x20] sm:$0xf]
      %v253 = vld [vmem:[%s235 + $0x24] sm:$0xf]
      %v254 = vld [vmem:[%s235 + $0x28] sm:$0xf]
      %v255 = vld [vmem:[%s235 + $0x2c] sm:$0xf]
      %v256 = vld [vmem:[%s235 + $0x30] sm:$0xf]
      %v257 = vld [vmem:[%s235 + $0x34] sm:$0xf]
      %v258 = vld [vmem:[%s235 + $0x38] sm:$0xf]
      %v259 = vld [vmem:[%s235 + $0x3c] sm:$0xf]
      %v260 = vld [vmem:[%s1] sm:$0xf]
      %v261 = vld [vmem:[%s1 + $0x4] sm:$0xf]
      %v262 = vld [vmem:[%s1 + $0x8] sm:$0xf]
      %v263 = vld [vmem:[%s1 + $0xc] sm:$0xf]
      %v264 = vld [vmem:[%s1 + $0x10] sm:$0x3]
      %v265 = vld [vmem:[%s2] sm:$0x1]
      %v267 = vperm.slane %v265, 0
      %v285 = vunpack.c.l.b16 %v244
      %v286 = vunpack.c.l.b16 %v245
      %v287 = vunpack.c.l.b16 %v246
      %v288 = vunpack.c.l.b16 %v247
      %v289 = vunpack.c.l.b16 %v248
      %v290 = vunpack.c.l.b16 %v249
      %v291 = vunpack.c.l.b16 %v250
      %v292 = vunpack.c.l.b16 %v251
      %v293 = vunpack.c.l.b16 %v252
      %v294 = vunpack.c.l.b16 %v253
      %v295 = vunpack.c.l.b16 %v254
      %v296 = vunpack.c.l.b16 %v255
      %v297 = vunpack.c.l.b16 %v256
      %v298 = vunpack.c.l.b16 %v257
      %v299 = vunpack.c.l.b16 %v258
      %v300 = vunpack.c.l.b16 %v259
      %v301 = vpack.c.b16 %v286, %v285
      %v302 = vpack.c.b16 %v288, %v287
      %v303 = vpack.c.b16 %v290, %v289
      %v304 = vpack.c.b16 %v292, %v291
      %v305 = vpack.c.b16 %v294, %v293
      %v306 = vpack.c.b16 %v296, %v295
      %v307 = vpack.c.b16 %v298, %v297
      %v308 = vpack.c.b16 %v300, %v299
      %v314 = vunpack.c.l.b16 %v260
      %v315 = vunpack.c.l.b16 %v261
      %v316 = vunpack.c.l.b16 %v262
      %v317 = vunpack.c.l.b16 %v263
      %v318 = vunpack.c.l.b16 %v264
      %v319 = vpack.c.b16 %v315, %v314
      %v320 = vpack.c.b16 %v317, %v316
      %v321 = vpack.c.b16 %v318, %v318
      %vm324 = vcmask 293888
      %v326 = vsel %vm324, %v301, 0
      %v329 = vsel %vm324, %v302, 0
      %v332 = vsel %vm324, %v303, 0
      %v335 = vsel %vm324, %v304, 0
      %v338 = vsel %vm324, %v305, 0
      %v341 = vsel %vm324, %v306, 0
      %v344 = vsel %vm324, %v307, 0
      %v347 = vsel %vm324, %v308, 0
      %vm349 = vcmask 1041408
      %v351 = vsel %vm349, %v321, 0
      %353 = vmatpush.bf16.msra.mxu0 0
      %354 = vmatpush.bf16.msra.mxu0 0
      %355 = vmatpush.bf16.msra.mxu0 0
      %356 = vmatpush.bf16.msra.mxu0 0
      %357 = vmatpush.bf16.msra.mxu0 0
      %358 = vmatpush.bf16.msra.mxu0 %v351
      %359 = vmatpush.bf16.msra.mxu0 %v320
      %360 = vmatpush.bf16.msra.mxu0 %v319
      %361 = vmatmul.bf16.gmra.mxu0 %v326
      %v362 = vpop.f32.mrf.mxu0
      %v363 = vadd.f32 %v267, %v362
      %v364 = vpop.f32.mrf.mxu0
      %v365 = vadd.f32 %v267, %v364
      %366 = vmatmul.bf16.gmra.mxu0 %v329
      %v367 = vpop.f32.mrf.mxu0
      %v368 = vadd.f32 %v267, %v367
      %v369 = vpop.f32.mrf.mxu0
      %v370 = vadd.f32 %v267, %v369
      %371 = vmatmul.bf16.gmra.mxu0 %v332
      %v372 = vpop.f32.mrf.mxu0
      %v373 = vadd.f32 %v267, %v372
      %v374 = vpop.f32.mrf.mxu0
      %v375 = vadd.f32 %v267, %v374
      %376 = vmatmul.bf16.gmra.mxu0 %v335
      %v377 = vpop.f32.mrf.mxu0
      %v378 = vadd.f32 %v267, %v377
      %v379 = vpop.f32.mrf.mxu0
      %v380 = vadd.f32 %v267, %v379
      %381 = vmatmul.bf16.gmra.mxu0 %v338
      %v382 = vpop.f32.mrf.mxu0
      %v383 = vadd.f32 %v267, %v382
      %v384 = vpop.f32.mrf.mxu0
      %v385 = vadd.f32 %v267, %v384
      %386 = vmatmul.bf16.gmra.mxu0 %v341
      %v387 = vpop.f32.mrf.mxu0
      %v388 = vadd.f32 %v267, %v387
      %v389 = vpop.f32.mrf.mxu0
      %v390 = vadd.f32 %v267, %v389
      %391 = vmatmul.bf16.gmra.mxu0 %v344
      %v392 = vpop.f32.mrf.mxu0
      %v393 = vadd.f32 %v267, %v392
      %v394 = vpop.f32.mrf.mxu0
      %v395 = vadd.f32 %v267, %v394
      %396 = vmatmul.bf16.gmra.mxu0 %v347
      %v397 = vpop.f32.mrf.mxu0
      %v398 = vadd.f32 %v267, %v397
      %v399 = vpop.f32.mrf.mxu0
      %v400 = vadd.f32 %v267, %v399
      %401 = vdwg.mxu0
      %v402 = vlaneseq
      %v403 = vshrl.u32 %v402, 7
      %v404 = vadd.s32 %v403, 8
      %v405 = vadd.s32 %v403, 16
      %v406 = vadd.s32 %v403, 24
      %v407 = vadd.s32 %v403, 32
      %v408 = vadd.s32 %v403, 40
      %v409 = vadd.s32 %v403, 48
      %v410 = vadd.s32 %v403, 56
      %v411 = vadd.s32 %v403, 64
      %v412 = vadd.s32 %v403, 72
      %v413 = vadd.s32 %v403, 80
      %v414 = vadd.s32 %v403, 88
      %v415 = vadd.s32 %v403, 96
      %v416 = vadd.s32 %v403, 104
      %v417 = vadd.s32 %v403, 112
      %v418 = vadd.s32 %v403, 120
      %s419 = smul.u32 %s18, 128
      %v420 = vstv %s419
      %v421 = vadd.s32 %v403, %v420
      %v422 = vadd.s32 %v404, %v420
      %v423 = vadd.s32 %v405, %v420
      %v424 = vadd.s32 %v406, %v420
      %v425 = vadd.s32 %v407, %v420
      %v426 = vadd.s32 %v408, %v420
      %v427 = vadd.s32 %v409, %v420
      %v428 = vadd.s32 %v410, %v420
      %v429 = vadd.s32 %v411, %v420
      %v430 = vadd.s32 %v412, %v420
      %v431 = vadd.s32 %v413, %v420
      %v432 = vadd.s32 %v414, %v420
      %v433 = vadd.s32 %v415, %v420
      %v434 = vadd.s32 %v416, %v420
      %v435 = vadd.s32 %v417, %v420
      %v436 = vadd.s32 %v418, %v420
      %vm437 = vcmp.lt.s32.totalorder %v421, 512
      %vm438 = vcmp.lt.s32.totalorder %v422, 512
      %vm439 = vcmp.lt.s32.totalorder %v423, 512
      %vm440 = vcmp.lt.s32.totalorder %v424, 512
      %vm441 = vcmp.lt.s32.totalorder %v425, 512
      %vm442 = vcmp.lt.s32.totalorder %v426, 512
      %vm443 = vcmp.lt.s32.totalorder %v427, 512
      %vm444 = vcmp.lt.s32.totalorder %v428, 512
      %vm445 = vcmp.lt.s32.totalorder %v429, 512
      %vm446 = vcmp.lt.s32.totalorder %v430, 512
      %vm447 = vcmp.lt.s32.totalorder %v431, 512
      %vm448 = vcmp.lt.s32.totalorder %v432, 512
      %vm449 = vcmp.lt.s32.totalorder %v433, 512
      %vm450 = vcmp.lt.s32.totalorder %v434, 512
      %vm451 = vcmp.lt.s32.totalorder %v435, 512
      %vm452 = vcmp.lt.s32.totalorder %v436, 512
      %v453 = vsel %vm437, 1, 0
      %v454 = vsel %vm438, 1, 0
      %v455 = vsel %vm439, 1, 0
      %v456 = vsel %vm440, 1, 0
      %v457 = vsel %vm441, 1, 0
      %v458 = vsel %vm442, 1, 0
      %v459 = vsel %vm443, 1, 0
      %v460 = vsel %vm444, 1, 0
      %v461 = vsel %vm445, 1, 0
      %v462 = vsel %vm446, 1, 0
      %v463 = vsel %vm447, 1, 0
      %v464 = vsel %vm448, 1, 0
      %v465 = vsel %vm449, 1, 0
      %v466 = vsel %vm450, 1, 0
      %v467 = vsel %vm451, 1, 0
      %v468 = vsel %vm452, 1, 0
      %vm469 = vcmp.eq.s32.totalorder %v453, 1
      %vm470 = vcmp.eq.s32.totalorder %v454, 1
      %vm471 = vcmp.eq.s32.totalorder %v455, 1
      %vm472 = vcmp.eq.s32.totalorder %v456, 1
      %vm473 = vcmp.eq.s32.totalorder %v457, 1
      %vm474 = vcmp.eq.s32.totalorder %v458, 1
      %vm475 = vcmp.eq.s32.totalorder %v459, 1
      %vm476 = vcmp.eq.s32.totalorder %v460, 1
      %vm477 = vcmp.eq.s32.totalorder %v461, 1
      %vm478 = vcmp.eq.s32.totalorder %v462, 1
      %vm479 = vcmp.eq.s32.totalorder %v463, 1
      %vm480 = vcmp.eq.s32.totalorder %v464, 1
      %vm481 = vcmp.eq.s32.totalorder %v465, 1
      %vm482 = vcmp.eq.s32.totalorder %v466, 1
      %vm483 = vcmp.eq.s32.totalorder %v467, 1
      %vm484 = vcmp.eq.s32.totalorder %v468, 1
      %v485 = vsel %vm469, %v363, 0.0
      %v486 = vsel %vm470, %v365, 0.0
      %v487 = vsel %vm471, %v368, 0.0
      %v488 = vsel %vm472, %v370, 0.0
      %v489 = vsel %vm473, %v373, 0.0
      %v490 = vsel %vm474, %v375, 0.0
      %v491 = vsel %vm475, %v378, 0.0
      %v492 = vsel %vm476, %v380, 0.0
      %v493 = vsel %vm477, %v383, 0.0
      %v494 = vsel %vm478, %v385, 0.0
      %v495 = vsel %vm479, %v388, 0.0
      %v496 = vsel %vm480, %v390, 0.0
      %v497 = vsel %vm481, %v393, 0.0
      %v498 = vsel %vm482, %v395, 0.0
      %v499 = vsel %vm483, %v398, 0.0
      %v500 = vsel %vm484, %v400, 0.0
      %v501 = vld [vmem:[#allocation2] sm:$0x1]
      %v502 = vadd.f32 %v485, %v486
      %v503 = vadd.f32 %v502, %v487
      %v504 = vadd.f32 %v503, %v488
      %v505 = vadd.f32 %v504, %v489
      %v506 = vadd.f32 %v505, %v490
      %v507 = vadd.f32 %v506, %v491
      %v508 = vadd.f32 %v507, %v492
      %v509 = vadd.f32 %v508, %v493
      %v510 = vadd.f32 %v509, %v494
      %v511 = vadd.f32 %v510, %v495
      %v512 = vadd.f32 %v511, %v496
      %v513 = vadd.f32 %v512, %v497
      %v514 = vadd.f32 %v513, %v498
      %v515 = vadd.f32 %v514, %v499
      %v516 = vadd.f32 %v515, %v500
      %v517 = vrot.slane %v516, 4
      %v518 = vadd.f32 %v516, %v517
      %v519 = vrot.slane %v518, 2
      %v520 = vadd.f32 %v518, %v519
      %v521 = vrot.slane %v520, 1
      %v522 = vadd.f32 %v520, %v521
      %v523 = vadd.f32 %v501, %v522
      %524 = vst [vmem:[#allocation2] sm:$0x1] %v523
      %v525 = vld [vmem:[#allocation3] sm:$0x1]
      %v526 = vmul.f32 %v485, %v485
      %v527 = vmul.f32 %v486, %v486
      %v528 = vmul.f32 %v487, %v487
      %v529 = vmul.f32 %v488, %v488
      %v530 = vmul.f32 %v489, %v489
      %v531 = vmul.f32 %v490, %v490
      %v532 = vmul.f32 %v491, %v491
      %v533 = vmul.f32 %v492, %v492
      %v534 = vmul.f32 %v493, %v493
      %v535 = vmul.f32 %v494, %v494
      %v536 = vmul.f32 %v495, %v495
      %v537 = vmul.f32 %v496, %v496
      %v538 = vmul.f32 %v497, %v497
      %v539 = vmul.f32 %v498, %v498
      %v540 = vmul.f32 %v499, %v499
      %v541 = vmul.f32 %v500, %v500
      %v542 = vadd.f32 %v526, %v527
      %v543 = vadd.f32 %v542, %v528
      %v544 = vadd.f32 %v543, %v529
      %v545 = vadd.f32 %v544, %v530
      %v546 = vadd.f32 %v545, %v531
      %v547 = vadd.f32 %v546, %v532
      %v548 = vadd.f32 %v547, %v533
      %v549 = vadd.f32 %v548, %v534
      %v550 = vadd.f32 %v549, %v535
      %v551 = vadd.f32 %v550, %v536
      %v552 = vadd.f32 %v551, %v537
      %v553 = vadd.f32 %v552, %v538
      %v554 = vadd.f32 %v553, %v539
      %v555 = vadd.f32 %v554, %v540
      %v556 = vadd.f32 %v555, %v541
      %v557 = vrot.slane %v556, 4
      %v558 = vadd.f32 %v556, %v557
      %v559 = vrot.slane %v558, 2
      %v560 = vadd.f32 %v558, %v559
      %v561 = vrot.slane %v560, 1
      %v562 = vadd.f32 %v560, %v561
      %v563 = vadd.f32 %v525, %v562
      %564 = vst [vmem:[#allocation3] sm:$0x1] %v563
      %p565 = scmp.eq.s32.totalorder %s18, 3
      // Predicated region
      $region45: #{reset_layer_forward.2} parent=39 // pred_check
        %p566 = pneg %p565
      $region46: #{reset_layer_forward.2} parent=39 // pred_check_branch
        %568 = sbr.rel (%p566) target = $region48
      $region47: #{reset_layer_forward.2} parent=39 // pred_region
        %v569 = vld [vmem:[#allocation2] sm:$0x1]
        %v570 = vmul.f32 %v569, 0.001953125
        %v571 = vld [vmem:[#allocation3] sm:$0x1]
        %v572 = vmul.f32 %v571, 0.001953125
        %v573 = vmul.f32 %v570, %v570
        %v574 = vsub.f32 %v572, %v573
        %v575 = vmax.f32 %v574, 0.0
        %v576 = vadd.f32 %v575, 1e-05
        %v577 = vrsqrt.pop %v576
        %v578 = vmul.f32 %v577, %v576
        %v579 = vmul.f32 %v578, %v577
        %v580 = vmul.f32 0.5, %v579
        %v581 = vsub.f32 1.5, %v580
        %v582 = vmul.f32 %v577, %v581
        %vm583 = vweird.f32 %v576
        %vm584 = vweird.f32 %v577
        %vm585 = vmor %vm583, %vm584
        %v586 = vsel %vm585, %v577, %v582
        %v587 = vld [vmem:[%s3] sm:$0x1]
        %v588 = vmul.f32 %v587, %v586
        %589 = vst [vmem:[%s5] sm:$0x1] %v588
        %v590 = vld [vmem:[%s4] sm:$0x1]
        %v591 = vmul.f32 %v570, %v588
        %v592 = vsub.f32 %v590, %v591
        %593 = vst [vmem:[%s6] sm:$0x1] %v592
      $region48: #{reset_layer_forward.2} parent=39 // pred_fallthru
        _
      // Predicated region
      $region49: #{reset_layer_forward.2} parent=39 // pred_check
        %p594 = pneg %p141
      $region50: #{reset_layer_forward.2} parent=39 // pred_check_branch
        %596 = sbr.rel (%p594) target = $region52
      $region51: #{reset_layer_forward.2} parent=39 // pred_region
        _
      $region52: #{reset_layer_forward.2} parent=39 // pred_fallthru
        _
      // Predicated region
      $region53: #{reset_layer_forward.2} parent=39 // pred_check
        %p597 = pneg %p162
      $region54: #{reset_layer_forward.2} parent=39 // pred_check_branch
        %599 = sbr.rel (%p597) target = $region56
      $region55: #{reset_layer_forward.2} parent=39 // pred_region
        _
      $region56: #{reset_layer_forward.2} parent=39 // pred_fallthru
        _
      // Predicated region
      $region57: #{reset_layer_forward.2} parent=39 // pred_check
        %p600 = pneg %p141
      $region58: #{reset_layer_forward.2} parent=39 // pred_check_branch
        %602 = sbr.rel (%p600) target = $region60
      $region59: #{reset_layer_forward.2} parent=39 // pred_region
        _
      $region60: #{reset_layer_forward.2} parent=39 // pred_fallthru
        _
      // Predicated region
      $region61: #{reset_layer_forward.2} parent=39 // pred_check
        %p603 = pneg %p162
      $region62: #{reset_layer_forward.2} parent=39 // pred_check_branch
        %605 = sbr.rel (%p603) target = $region64
      $region63: #{reset_layer_forward.2} parent=39 // pred_region
        _
      $region64: #{reset_layer_forward.2} parent=39 // pred_fallthru
        _
    $region40: #{reset_layer_forward.2} parent=5 // pred_fallthru
      _
    %p606 = scmp.le.s32.totalorder 2, %s13
    // Predicated region
    $region65: #{reset_layer_forward.2} parent=5 // pred_check
      %p607 = pneg %p606
    $region66: #{reset_layer_forward.2} parent=5 // pred_check_branch
      %609 = sbr.rel (%p607) target = $region68
    $region67: #{reset_layer_forward.2} parent=5 // pred_region
      %s610 = ssub.s32 %s13, 2
    $region68: #{reset_layer_forward.2} parent=5 // pred_fallthru
      _
  $region6: #{reset_layer_forward.2} parent=0 // loop_footer
    %s17 = sadd.s32 1, %s13
  $region7: #{reset_layer_forward.2} parent=0 // loop_footer_branch
    %12 = sbr.rel target = $region3
  $region8: #{reset_layer_forward.2} parent=0 // loop_exit
    _

// kernel: reset_layer_forward.3
$region0: #{reset_layer_forward.3}
  #allocation0 [shape = 'u32[]', space=smem, size = 0x4, offset = 0x4, fixed_abs, tag = 'smem constant byte address 0x4 - core index']
  #allocation1 [shape = 'u32[72,128]{1,0:T(1,128)}', space=vmem, size = 0x9000, scoped, tag = 'internal scratch']
  %s0 = inlined_call_operand.vmem [shape: bf16[512,36], index: 0, kind: input, shape index: {}]
  %s1 = inlined_call_operand.vmem [shape: bf16[36,128], index: 1, kind: input, shape index: {}]
  %s2 = inlined_call_operand.vmem [shape: f32[1,128], index: 2, kind: input, shape index: {}]
  %s3 = inlined_call_operand.vmem [shape: f32[1,128], index: 3, kind: input, shape index: {}]
  %s4 = inlined_call_operand.vmem [shape: f32[1,128], index: 4, kind: input, shape index: {}]
  %s5 = inlined_call_operand.vmem [shape: f32[512,128], index: 5, kind: output, shape index: {}]
  %s6 = sld [smem:[#allocation0]]
  $region53: #{reset_layer_forward.3} parent=0
    _
  %s8 = ssub.s32 1, %s6
  %s9 = scalar_select 0, %s8, %s6
  loop: start=0, step=1, limit=6
  $region2: #{reset_layer_forward.3} parent=0 // loop_pre_header
    _
  $region3: #{reset_layer_forward.3} parent=0 // loop_header
    %s11 = sphi 0, %s15
    %p12 = scmp.ge.s32.totalorder %s11, 6
    %s21 = sphi 0, %s23
    %s24 = sphi 0, %s21
    %s25 = sphi 0, %s24
    %s41 = sphi 0, %s25
    %s45 = sphi 0, %s45
    %s47 = sphi 0, %s45
    %s48 = sphi 0, %s47
    %s62 = sphi 0, %s48
    %s66 = sphi 0, %s66
    %s68 = sphi 0, %s66
    %s69 = sphi 0, %s68
    %s83 = sphi 0, %s69
    %s87 = sphi 0, %s87
    %s89 = sphi 0, %s87
    %s90 = sphi 0, %s89
    %s104 = sphi 0, %s90
    %s108 = sphi 0, %s108
    %s110 = sphi 0, %s108
    %s111 = sphi 0, %s110
    %s125 = sphi 0, %s111
    %s131 = sphi 0, %s133
    %s134 = sphi 0, %s131
    %s135 = sphi 0, %s134
    %s151 = sphi 0, %s135
  $region4: #{reset_layer_forward.3} parent=0 // loop_header_branch
    %14 = sbr.rel (%p12) target = $region8
  $region5: #{reset_layer_forward.3} parent=0 // loop_body
    %s16 = ssub.s32 %s11, 1
    %s17 = ssub.s32 %s11, 2
    %s18 = sadd.s32 %s11, 1
    %s19 = ssub.s32 %s11, %s18
    %p20 = scmp.eq.s32.totalorder %s19, 0
    %s22 = sadd.s32 %s21, 1
    %s23 = scalar_select %p20, %s21, %s22
    %p26 = pneg %p20
    %p27 = scmp.eq.s32.totalorder %s11, 3
    %p28 = por %p26, %p27
    %p29 = scmp.ne.s32.totalorder %s21, %s24
    %p30 = scmp.eq.s32.totalorder %s11, 0
    %p31 = por %p29, %p30
    %p32 = scmp.ne.s32.totalorder %s21, %s24
    %p33 = scmp.eq.s32.totalorder %s16, 3
    %p34 = por %p32, %p33
    %p35 = scmp.ne.s32.totalorder %s24, %s25
    %p36 = scmp.eq.s32.totalorder %s16, 0
    %p37 = por %p35, %p36
    %p38 = scmp.ne.s32.totalorder %s24, %s25
    %p39 = scmp.eq.s32.totalorder %s17, 3
    %p40 = por %p38, %p39
    %p42 = scmp.ne.s32.totalorder %s25, %s41
    %p43 = scmp.eq.s32.totalorder %s17, 0
    %p44 = por %p42, %p43
    %s46 = sadd.s32 %s45, 1
    %p49 = scmp.eq.s32.totalorder %s11, 3
    %p50 = scmp.ne.s32.totalorder %s45, %s47
    %p51 = scmp.eq.s32.totalorder %s11, 0
    %p52 = por %p50, %p51
    %p53 = scmp.ne.s32.totalorder %s45, %s47
    %p54 = scmp.eq.s32.totalorder %s16, 3
    %p55 = por %p53, %p54
    %p56 = scmp.ne.s32.totalorder %s47, %s48
    %p57 = scmp.eq.s32.totalorder %s16, 0
    %p58 = por %p56, %p57
    %p59 = scmp.ne.s32.totalorder %s47, %s48
    %p60 = scmp.eq.s32.totalorder %s17, 3
    %p61 = por %p59, %p60
    %p63 = scmp.ne.s32.totalorder %s48, %s62
    %p64 = scmp.eq.s32.totalorder %s17, 0
    %p65 = por %p63, %p64
    %s67 = sadd.s32 %s66, 1
    %p70 = scmp.eq.s32.totalorder %s11, 3
    %p71 = scmp.ne.s32.totalorder %s66, %s68
    %p72 = scmp.eq.s32.totalorder %s11, 0
    %p73 = por %p71, %p72
    %p74 = scmp.ne.s32.totalorder %s66, %s68
    %p75 = scmp.eq.s32.totalorder %s16, 3
    %p76 = por %p74, %p75
    %p77 = scmp.ne.s32.totalorder %s68, %s69
    %p78 = scmp.eq.s32.totalorder %s16, 0
    %p79 = por %p77, %p78
    %p80 = scmp.ne.s32.totalorder %s68, %s69
    %p81 = scmp.eq.s32.totalorder %s17, 3
    %p82 = por %p80, %p81
    %p84 = scmp.ne.s32.totalorder %s69, %s83
    %p85 = scmp.eq.s32.totalorder %s17, 0
    %p86 = por %p84, %p85
    %s88 = sadd.s32 %s87, 1
    %p91 = scmp.eq.s32.totalorder %s11, 3
    %p92 = scmp.ne.s32.totalorder %s87, %s89
    %p93 = scmp.eq.s32.totalorder %s11, 0
    %p94 = por %p92, %p93
    %p95 = scmp.ne.s32.totalorder %s87, %s89
    %p96 = scmp.eq.s32.totalorder %s16, 3
    %p97 = por %p95, %p96
    %p98 = scmp.ne.s32.totalorder %s89, %s90
    %p99 = scmp.eq.s32.totalorder %s16, 0
    %p100 = por %p98, %p99
    %p101 = scmp.ne.s32.totalorder %s89, %s90
    %p102 = scmp.eq.s32.totalorder %s17, 3
    %p103 = por %p101, %p102
    %p105 = scmp.ne.s32.totalorder %s90, %s104
    %p106 = scmp.eq.s32.totalorder %s17, 0
    %p107 = por %p105, %p106
    %s109 = sadd.s32 %s108, 1
    %p112 = scmp.eq.s32.totalorder %s11, 3
    %p113 = scmp.ne.s32.totalorder %s108, %s110
    %p114 = scmp.eq.s32.totalorder %s11, 0
    %p115 = por %p113, %p114
    %p116 = scmp.ne.s32.totalorder %s108, %s110
    %p117 = scmp.eq.s32.totalorder %s16, 3
    %p118 = por %p116, %p117
    %p119 = scmp.ne.s32.totalorder %s110, %s111
    %p120 = scmp.eq.s32.totalorder %s16, 0
    %p121 = por %p119, %p120
    %p122 = scmp.ne.s32.totalorder %s110, %s111
    %p123 = scmp.eq.s32.totalorder %s17, 3
    %p124 = por %p122, %p123
    %p126 = scmp.ne.s32.totalorder %s111, %s125
    %p127 = scmp.eq.s32.totalorder %s17, 0
    %p128 = por %p126, %p127
    %s129 = ssub.s32 %s11, %s18
    %p130 = scmp.eq.s32.totalorder %s129, 0
    %s132 = sadd.s32 %s131, 1
    %s133 = scalar_select %p130, %s131, %s132
    %p136 = pneg %p130
    %p137 = scmp.eq.s32.totalorder %s11, 3
    %p138 = por %p136, %p137
    %p139 = scmp.ne.s32.totalorder %s131, %s134
    %p140 = scmp.eq.s32.totalorder %s11, 0
    %p141 = por %p139, %p140
    %p142 = scmp.ne.s32.totalorder %s131, %s134
    %p143 = scmp.eq.s32.totalorder %s16, 3
    %p144 = por %p142, %p143
    %p145 = scmp.ne.s32.totalorder %s134, %s135
    %p146 = scmp.eq.s32.totalorder %s16, 0
    %p147 = por %p145, %p146
    %p148 = scmp.ne.s32.totalorder %s134, %s135
    %p149 = scmp.eq.s32.totalorder %s17, 3
    %p150 = por %p148, %p149
    %p152 = scmp.ne.s32.totalorder %s135, %s151
    %p153 = scmp.eq.s32.totalorder %s17, 0
    %p154 = por %p152, %p153
    %p155 = scmp.le.s32.totalorder 1, %s11
    %p156 = scmp.lt.s32.totalorder %s11, 5
    %p157 = pnand %p155, %p156
    %p158 = pneg %p157
    // Predicated region
    $region9: #{reset_layer_forward.3} parent=5 // pred_check
      _
    $region10: #{reset_layer_forward.3} parent=5 // pred_check_branch
      %160 = sbr.rel (%p157) target = $region12
    $region11: #{reset_layer_forward.3} parent=5 // pred_region
      %s161 = ssub.s32 %s11, 1
      // Predicated region
      $region13: #{reset_layer_forward.3} parent=11 // pred_check
        %p162 = pneg %p58
      $region14: #{reset_layer_forward.3} parent=11 // pred_check_branch
        %164 = sbr.rel (%p162) target = $region16
      $region15: #{reset_layer_forward.3} parent=11 // pred_region
        _
      $region16: #{reset_layer_forward.3} parent=11 // pred_fallthru
        _
      // Predicated region
      $region17: #{reset_layer_forward.3} parent=11 // pred_check
        %p165 = pneg %p79
      $region18: #{reset_layer_forward.3} parent=11 // pred_check_branch
        %167 = sbr.rel (%p165) target = $region20
      $region19: #{reset_layer_forward.3} parent=11 // pred_region
        _
      $region20: #{reset_layer_forward.3} parent=11 // pred_fallthru
        _
      // Predicated region
      $region21: #{reset_layer_forward.3} parent=11 // pred_check
        %p168 = pneg %p100
      $region22: #{reset_layer_forward.3} parent=11 // pred_check_branch
        %170 = sbr.rel (%p168) target = $region24
      $region23: #{reset_layer_forward.3} parent=11 // pred_region
        _
      $region24: #{reset_layer_forward.3} parent=11 // pred_fallthru
        _
      // Predicated region
      $region25: #{reset_layer_forward.3} parent=11 // pred_check
        %p171 = pneg %p121
      $region26: #{reset_layer_forward.3} parent=11 // pred_check_branch
        %173 = sbr.rel (%p171) target = $region28
      $region27: #{reset_layer_forward.3} parent=11 // pred_region
        _
      $region28: #{reset_layer_forward.3} parent=11 // pred_fallthru
        _
    $region12: #{reset_layer_forward.3} parent=5 // pred_fallthru
      _
    %p174 = scmp.lt.s32.totalorder %s11, 4
    // Predicated region
    $region29: #{reset_layer_forward.3} parent=5 // pred_check
      %p175 = pneg %p174
    $region30: #{reset_layer_forward.3} parent=5 // pred_check_branch
      %177 = sbr.rel (%p175) target = $region32
    $region31: #{reset_layer_forward.3} parent=5 // pred_region
      // Predicated region
      $region33: #{reset_layer_forward.3} parent=31 // pred_check
        %p178 = pneg %p31
      $region34: #{reset_layer_forward.3} parent=31 // pred_check_branch
        %180 = sbr.rel (%p178) target = $region36
      $region35: #{reset_layer_forward.3} parent=31 // pred_region
        %s181 = smul.u32 16, %s11
        %p182 = scmp.lt.s32.totalorder %s181, 63
        %s183 = scalar_select %p182, %s181, 63
        %s184 = smul.addr %s183, 4
        %s185 = scalar_lea.vmem %s0, %s184
        %s186 = smul.u32 16, %s11
      $region36: #{reset_layer_forward.3} parent=31 // pred_fallthru
        _
    $region32: #{reset_layer_forward.3} parent=5 // pred_fallthru
      _
    %p187 = scmp.le.s32.totalorder 1, %s11
    %p188 = scmp.lt.s32.totalorder %s11, 5
    %p189 = pnand %p187, %p188
    %p190 = pneg %p189
    // Predicated region
    $region37: #{reset_layer_forward.3} parent=5 // pred_check
      _
    $region38: #{reset_layer_forward.3} parent=5 // pred_check_branch
      %192 = sbr.rel (%p189) target = $region40
    $region39: #{reset_layer_forward.3} parent=5 // pred_region
      %s193 = ssub.s32 %s11, 1
      %s194 = smul.u32 16, %s16
      %p195 = scmp.lt.s32.totalorder %s194, 63
      %s196 = scalar_select %p195, %s194, 63
      %s197 = smul.addr %s196, 4
      %s198 = scalar_lea.vmem %s0, %s197
      %p199 = pneg %p37
      %p200 = pneg %p34
      %p201 = pneg %p58
      %p202 = pneg %p55
      %p203 = pneg %p79
      %p204 = pneg %p76
      %p205 = pneg %p100
      %p206 = pneg %p97
      %p207 = pneg %p121
      %p208 = pneg %p118
      %p209 = pneg %p147
      %p210 = pneg %p144
      %s211 = smul.u32 16, %s16
      %p212 = scmp.lt.s32.totalorder %s211, 63
      %s213 = scalar_select %p212, %s211, 63
      %s214 = smul.addr %s213, 8
      %s215 = scalar_lea.vmem %s5, %s214
      %s216 = smul.u32 16, %s16
      %p217 = scmp.lt.s32.totalorder %s216, 63
      %s218 = scalar_select %p217, %s216, 63
      %s219 = smul.addr %s218, 4
      %s220 = scalar_lea.vmem %s0, %s219
      %s221 = smul.u32 16, %s16
      %s222 = smul.u32 16, %s16
      %p223 = scmp.lt.s32.totalorder %s222, 63
      %s224 = scalar_select %p223, %s222, 63
      %s225 = smul.addr %s224, 8
      %s226 = scalar_lea.vmem %s5, %s225
      %s227 = smul.u32 16, %s16
      %v229 = vld [vmem:[%s220] sm:$0xf]
      %v230 = vld [vmem:[%s220 + $0x4] sm:$0xf]
      %v231 = vld [vmem:[%s220 + $0x8] sm:$0xf]
      %v232 = vld [vmem:[%s220 + $0xc] sm:$0xf]
      %v233 = vld [vmem:[%s220 + $0x10] sm:$0xf]
      %v234 = vld [vmem:[%s220 + $0x14] sm:$0xf]
      %v235 = vld [vmem:[%s220 + $0x18] sm:$0xf]
      %v236 = vld [vmem:[%s220 + $0x1c] sm:$0xf]
      %v237 = vld [vmem:[%s220 + $0x20] sm:$0xf]
      %v238 = vld [vmem:[%s220 + $0x24] sm:$0xf]
      %v239 = vld [vmem:[%s220 + $0x28] sm:$0xf]
      %v240 = vld [vmem:[%s220 + $0x2c] sm:$0xf]
      %v241 = vld [vmem:[%s220 + $0x30] sm:$0xf]
      %v242 = vld [vmem:[%s220 + $0x34] sm:$0xf]
      %v243 = vld [vmem:[%s220 + $0x38] sm:$0xf]
      %v244 = vld [vmem:[%s220 + $0x3c] sm:$0xf]
      %v245 = vld [vmem:[%s1] sm:$0xf]
      %v246 = vld [vmem:[%s1 + $0x4] sm:$0xf]
      %v247 = vld [vmem:[%s1 + $0x8] sm:$0xf]
      %v248 = vld [vmem:[%s1 + $0xc] sm:$0xf]
      %v249 = vld [vmem:[%s1 + $0x10] sm:$0x3]
      %v250 = vld [vmem:[%s2] sm:$0x1]
      %v252 = vperm.slane %v250, 0
      %v270 = vunpack.c.l.b16 %v229
      %v271 = vunpack.c.l.b16 %v230
      %v272 = vunpack.c.l.b16 %v231
      %v273 = vunpack.c.l.b16 %v232
      %v274 = vunpack.c.l.b16 %v233
      %v275 = vunpack.c.l.b16 %v234
      %v276 = vunpack.c.l.b16 %v235
      %v277 = vunpack.c.l.b16 %v236
      %v278 = vunpack.c.l.b16 %v237
      %v279 = vunpack.c.l.b16 %v238
      %v280 = vunpack.c.l.b16 %v239
      %v281 = vunpack.c.l.b16 %v240
      %v282 = vunpack.c.l.b16 %v241
      %v283 = vunpack.c.l.b16 %v242
      %v284 = vunpack.c.l.b16 %v243
      %v285 = vunpack.c.l.b16 %v244
      %v286 = vpack.c.b16 %v271, %v270
      %v287 = vpack.c.b16 %v273, %v272
      %v288 = vpack.c.b16 %v275, %v274
      %v289 = vpack.c.b16 %v277, %v276
      %v290 = vpack.c.b16 %v279, %v278
      %v291 = vpack.c.b16 %v281, %v280
      %v292 = vpack.c.b16 %v283, %v282
      %v293 = vpack.c.b16 %v285, %v284
      %v299 = vunpack.c.l.b16 %v245
      %v300 = vunpack.c.l.b16 %v246
      %v301 = vunpack.c.l.b16 %v247
      %v302 = vunpack.c.l.b16 %v248
      %v303 = vunpack.c.l.b16 %v249
      %v304 = vpack.c.b16 %v300, %v299
      %v305 = vpack.c.b16 %v302, %v301
      %v306 = vpack.c.b16 %v303, %v303
      %vm309 = vcmask 293888
      %v311 = vsel %vm309, %v286, 0
      %v314 = vsel %vm309, %v287, 0
      %v317 = vsel %vm309, %v288, 0
      %v320 = vsel %vm309, %v289, 0
      %v323 = vsel %vm309, %v290, 0
      %v326 = vsel %vm309, %v291, 0
      %v329 = vsel %vm309, %v292, 0
      %v332 = vsel %vm309, %v293, 0
      %vm334 = vcmask 1041408
      %v336 = vsel %vm334, %v306, 0
      %338 = vmatpush.bf16.msra.mxu0 0
      %339 = vmatpush.bf16.msra.mxu0 0
      %340 = vmatpush.bf16.msra.mxu0 0
      %341 = vmatpush.bf16.msra.mxu0 0
      %342 = vmatpush.bf16.msra.mxu0 0
      %343 = vmatpush.bf16.msra.mxu0 %v336
      %344 = vmatpush.bf16.msra.mxu0 %v305
      %345 = vmatpush.bf16.msra.mxu0 %v304
      %346 = vmatmul.bf16.gmra.mxu0 %v311
      %v347 = vpop.f32.mrf.mxu0
      %v348 = vadd.f32 %v252, %v347
      %v349 = vpop.f32.mrf.mxu0
      %v350 = vadd.f32 %v252, %v349
      %351 = vmatmul.bf16.gmra.mxu0 %v314
      %v352 = vpop.f32.mrf.mxu0
      %v353 = vadd.f32 %v252, %v352
      %v354 = vpop.f32.mrf.mxu0
      %v355 = vadd.f32 %v252, %v354
      %356 = vmatmul.bf16.gmra.mxu0 %v317
      %v357 = vpop.f32.mrf.mxu0
      %v358 = vadd.f32 %v252, %v357
      %v359 = vpop.f32.mrf.mxu0
      %v360 = vadd.f32 %v252, %v359
      %361 = vmatmul.bf16.gmra.mxu0 %v320
      %v362 = vpop.f32.mrf.mxu0
      %v363 = vadd.f32 %v252, %v362
      %v364 = vpop.f32.mrf.mxu0
      %v365 = vadd.f32 %v252, %v364
      %366 = vmatmul.bf16.gmra.mxu0 %v323
      %v367 = vpop.f32.mrf.mxu0
      %v368 = vadd.f32 %v252, %v367
      %v369 = vpop.f32.mrf.mxu0
      %v370 = vadd.f32 %v252, %v369
      %371 = vmatmul.bf16.gmra.mxu0 %v326
      %v372 = vpop.f32.mrf.mxu0
      %v373 = vadd.f32 %v252, %v372
      %v374 = vpop.f32.mrf.mxu0
      %v375 = vadd.f32 %v252, %v374
      %376 = vmatmul.bf16.gmra.mxu0 %v329
      %v377 = vpop.f32.mrf.mxu0
      %v378 = vadd.f32 %v252, %v377
      %v379 = vpop.f32.mrf.mxu0
      %v380 = vadd.f32 %v252, %v379
      %381 = vmatmul.bf16.gmra.mxu0 %v332
      %v382 = vpop.f32.mrf.mxu0
      %v383 = vadd.f32 %v252, %v382
      %v384 = vpop.f32.mrf.mxu0
      %v385 = vadd.f32 %v252, %v384
      %386 = vdwg.mxu0
      %v387 = vld [vmem:[%s3] sm:$0x1]
      %v389 = vperm.slane %v387, 0
      %v391 = vmul.f32 %v348, %v389
      %v392 = vmul.f32 %v350, %v389
      %v393 = vmul.f32 %v353, %v389
      %v394 = vmul.f32 %v355, %v389
      %v395 = vmul.f32 %v358, %v389
      %v396 = vmul.f32 %v360, %v389
      %v397 = vmul.f32 %v363, %v389
      %v398 = vmul.f32 %v365, %v389
      %v399 = vmul.f32 %v368, %v389
      %v400 = vmul.f32 %v370, %v389
      %v401 = vmul.f32 %v373, %v389
      %v402 = vmul.f32 %v375, %v389
      %v403 = vmul.f32 %v378, %v389
      %v404 = vmul.f32 %v380, %v389
      %v405 = vmul.f32 %v383, %v389
      %v406 = vmul.f32 %v385, %v389
      %v407 = vld [vmem:[%s4] sm:$0x1]
      %v409 = vperm.slane %v407, 0
      %v411 = vadd.f32 %v391, %v409
      %v412 = vadd.f32 %v392, %v409
      %v413 = vadd.f32 %v393, %v409
      %v414 = vadd.f32 %v394, %v409
      %v415 = vadd.f32 %v395, %v409
      %v416 = vadd.f32 %v396, %v409
      %v417 = vadd.f32 %v397, %v409
      %v418 = vadd.f32 %v398, %v409
      %v419 = vadd.f32 %v399, %v409
      %v420 = vadd.f32 %v400, %v409
      %v421 = vadd.f32 %v401, %v409
      %v422 = vadd.f32 %v402, %v409
      %v423 = vadd.f32 %v403, %v409
      %v424 = vadd.f32 %v404, %v409
      %v425 = vadd.f32 %v405, %v409
      %v426 = vadd.f32 %v406, %v409
      %427 = vst [vmem:[%s226] sm:$0xff] %v411
      %428 = vst [vmem:[%s226 + $0x8] sm:$0xff] %v412
      %429 = vst [vmem:[%s226 + $0x10] sm:$0xff] %v413
      %430 = vst [vmem:[%s226 + $0x18] sm:$0xff] %v414
      %431 = vst [vmem:[%s226 + $0x20] sm:$0xff] %v415
      %432 = vst [vmem:[%s226 + $0x28] sm:$0xff] %v416
      %433 = vst [vmem:[%s226 + $0x30] sm:$0xff] %v417
      %434 = vst [vmem:[%s226 + $0x38] sm:$0xff] %v418
      %435 = vst [vmem:[%s226 + $0x40] sm:$0xff] %v419
      %436 = vst [vmem:[%s226 + $0x48] sm:$0xff] %v420
      %437 = vst [vmem:[%s226 + $0x50] sm:$0xff] %v421
      %438 = vst [vmem:[%s226 + $0x58] sm:$0xff] %v422
      %439 = vst [vmem:[%s226 + $0x60] sm:$0xff] %v423
      %440 = vst [vmem:[%s226 + $0x68] sm:$0xff] %v424
      %441 = vst [vmem:[%s226 + $0x70] sm:$0xff] %v425
      %442 = vst [vmem:[%s226 + $0x78] sm:$0xff] %v426
      %s443 = smul.u32 16, %s16
      %p444 = scmp.lt.s32.totalorder %s443, 63
      %s445 = scalar_select %p444, %s443, 63
      %s446 = smul.addr %s445, 8
      %s447 = scalar_lea.vmem %s5, %s446
      // Predicated region
      $region41: #{reset_layer_forward.3} parent=39 // pred_check
        %p448 = pneg %p144
      $region42: #{reset_layer_forward.3} parent=39 // pred_check_branch
        %450 = sbr.rel (%p448) target = $region44
      $region43: #{reset_layer_forward.3} parent=39 // pred_region
        %s451 = smul.u32 16, %s16
      $region44: #{reset_layer_forward.3} parent=39 // pred_fallthru
        _
    $region40: #{reset_layer_forward.3} parent=5 // pred_fallthru
      _
    %p452 = scmp.le.s32.totalorder 2, %s11
    // Predicated region
    $region45: #{reset_layer_forward.3} parent=5 // pred_check
      %p453 = pneg %p452
    $region46: #{reset_layer_forward.3} parent=5 // pred_check_branch
      %455 = sbr.rel (%p453) target = $region48
    $region47: #{reset_layer_forward.3} parent=5 // pred_region
      %s456 = ssub.s32 %s11, 2
      // Predicated region
      $region49: #{reset_layer_forward.3} parent=47 // pred_check
        %p457 = pneg %p150
      $region50: #{reset_layer_forward.3} parent=47 // pred_check_branch
        %459 = sbr.rel (%p457) target = $region52
      $region51: #{reset_layer_forward.3} parent=47 // pred_region
        %s460 = smul.u32 16, %s17
        %p461 = scmp.lt.s32.totalorder %s460, 63
        %s462 = scalar_select %p461, %s460, 63
        %s463 = smul.addr %s462, 8
        %s464 = scalar_lea.vmem %s5, %s463
      $region52: #{reset_layer_forward.3} parent=47 // pred_fallthru
        _
    $region48: #{reset_layer_forward.3} parent=5 // pred_fallthru
      _
  $region6: #{reset_layer_forward.3} parent=0 // loop_footer
    %s15 = sadd.s32 1, %s11
  $region7: #{reset_layer_forward.3} parent=0 // loop_footer_branch
    %10 = sbr.rel target = $region3
  $region8: #{reset_layer_forward.3} parent=0 // loop_exit
    _

</llo_original>
